<compile_context>
chip_gen: v6e
topology: v6e:2x2x1
jax: 0.10.0
libtpu: 0.0.40
codegen_flags: <defaults>
</compile_context>

<pallas_src>
import functools

import jax
import jax.numpy as jnp
from jax import lax
from jax.experimental import pallas as pl
from jax.experimental.pallas import tpu as pltpu


def _se_kernel(x_ref, w1_ref, b1_ref, w2_ref, b2_ref, o_ref, *, use_avg, scale_act):
    # x_ref: (NB, C, L)   w1_ref: (S, C)  b1_ref: (1, S)
    #                     w2_ref: (C, S)  b2_ref: (1, C)   o_ref: (NB, C, L)
    x = x_ref[...].astype(jnp.float32)

    # AdaptiveAvgPool1d(1) / AdaptiveMaxPool1d(1): reduce the lane (L) axis.
    if use_avg:
        pooled = jnp.mean(x, axis=2)                      # (NB, C)
    else:
        pooled = jnp.max(x, axis=2)                       # (NB, C)

    # fc1: Linear(C -> S); weight kept PyTorch-style (S, C): contract C (axis 1 of both).
    h = lax.dot_general(pooled, w1_ref[...], (((1,), (1,)), ((), ())),
                        preferred_element_type=jnp.float32) + b1_ref[...]
    h = jnp.maximum(h, 0.0)                               # ReLU

    # fc2: Linear(S -> C); weight (C, S): contract S (axis 1 of both).
    s = lax.dot_general(h, w2_ref[...], (((1,), (1,)), ((), ())),
                        preferred_element_type=jnp.float32) + b2_ref[...]

    if scale_act == "sigmoid":
        s = jax.nn.sigmoid(s)
    elif scale_act == "hardsigmoid":
        s = jnp.clip(s / 6.0 + 0.5, 0.0, 1.0)
    # else: identity (scale_activation == nn.Identity)

    # One fused pass over the big slab: per-(batch, channel) scale broadcast over L.
    o_ref[...] = (x * s[:, :, None]).astype(o_ref.dtype)


def squeeze_excitation_1d(x, fc1_w, fc1_b, fc2_w, fc2_b, *, setype="avg",
                          scale_activation="sigmoid", batch_tile=8):
    """Fused SqueezeExcitation1d forward.

    x:      (N, C, L)  channel-first, like the PyTorch module
    fc1_w:  (S, C)     nn.Linear(input_channels, squeeze_channels).weight
    fc1_b:  (S,)
    fc2_w:  (C, S)     nn.Linear(squeeze_channels, input_channels).weight
    fc2_b:  (C,)
    """
    n, c, length = x.shape
    s = fc1_w.shape[0]
    assert fc1_w.shape == (s, c) and fc2_w.shape == (c, s)
    assert fc1_b.shape == (s,) and fc2_b.shape == (c,)

    nb = min(batch_tile, n)
    n_pad = pl.cdiv(n, nb) * nb
    xp = x if n_pad == n else jnp.pad(x, ((0, n_pad - n), (0, 0), (0, 0)))

    b1 = fc1_b.reshape(1, s).astype(jnp.float32)
    b2 = fc2_b.reshape(1, c).astype(jnp.float32)

    kern = functools.partial(_se_kernel, use_avg=(setype == "avg"),
                             scale_act=scale_activation)

    out = pl.pallas_call(
        kern,
        out_shape=jax.ShapeDtypeStruct((n_pad, c, length), x.dtype),
        grid_spec=pltpu.PrefetchScalarGridSpec(
            num_scalar_prefetch=0,
            grid=(n_pad // nb,),
            in_specs=[
                pl.BlockSpec((nb, c, length), lambda i: (i, 0, 0)),   # x slab
                pl.BlockSpec((s, c), lambda i: (0, 0)),               # fc1 weight (resident)
                pl.BlockSpec((1, s), lambda i: (0, 0)),               # fc1 bias
                pl.BlockSpec((c, s), lambda i: (0, 0)),               # fc2 weight (resident)
                pl.BlockSpec((1, c), lambda i: (0, 0)),               # fc2 bias
            ],
            out_specs=pl.BlockSpec((nb, c, length), lambda i: (i, 0, 0)),
        ),
        compiler_params=pltpu.CompilerParams(
            dimension_semantics=("parallel",),
        ),
    )(xp, fc1_w, b1, fc2_w, b2)

    return out[:n] if n_pad != n else out


def _reference(x, fc1_w, fc1_b, fc2_w, fc2_b, *, setype="avg", scale_activation="sigmoid"):
    # Pure-JAX mirror of the PyTorch forward.
    pooled = jnp.mean(x, axis=2) if setype == "avg" else jnp.max(x, axis=2)   # (N, C)
    h = jnp.maximum(pooled @ fc1_w.T + fc1_b, 0.0)                            # (N, S)
    sc = h @ fc2_w.T + fc2_b                                                  # (N, C)
    if scale_activation == "sigmoid":
        sc = jax.nn.sigmoid(sc)
    elif scale_activation == "hardsigmoid":
        sc = jnp.clip(sc / 6.0 + 0.5, 0.0, 1.0)
    return x * sc[:, :, None]


if __name__ == "__main__":
    key = jax.random.PRNGKey(0)
    k1, k2, k3, k4, k5 = jax.random.split(key, 5)

    # SqueezeExcitation1d(input_channels=32, squeeze_channels=8, nn.Sigmoid)
    N, C, S, L = 2, 32, 8, 16
    x = jax.random.normal(k1, (N, C, L), jnp.float32)
    fc1_w = jax.random.normal(k2, (S, C), jnp.float32) * (1.0 / jnp.sqrt(C))
    fc1_b = 0.1 * jax.random.normal(k3, (S,), jnp.float32)
    fc2_w = jax.random.normal(k4, (C, S), jnp.float32) * (1.0 / jnp.sqrt(S))
    fc2_b = 0.1 * jax.random.normal(k5, (C,), jnp.float32)

    # setype='avg' + Sigmoid (the standard SE configuration)
    out = squeeze_excitation_1d(x, fc1_w, fc1_b, fc2_w, fc2_b,
                                setype="avg", scale_activation="sigmoid")
    out = jax.block_until_ready(out)
    ref = _reference(x, fc1_w, fc1_b, fc2_w, fc2_b, setype="avg", scale_activation="sigmoid")
    assert out.shape == (N, C, L)
    assert jnp.allclose(out, ref, atol=2e-2, rtol=2e-2), float(jnp.max(jnp.abs(out - ref)))

    # setype='max' branch (AdaptiveMaxPool1d(1))
    out_m = squeeze_excitation_1d(x, fc1_w, fc1_b, fc2_w, fc2_b,
                                  setype="max", scale_activation="sigmoid")
    out_m = jax.block_until_ready(out_m)
    ref_m = _reference(x, fc1_w, fc1_b, fc2_w, fc2_b, setype="max", scale_activation="sigmoid")
    assert jnp.allclose(out_m, ref_m, atol=2e-2, rtol=2e-2), float(jnp.max(jnp.abs(out_m - ref_m)))

    print("KERNEL_OK")
</pallas_src>

<mosaic_0001>
module attributes {stable_mosaic.version = 11 : i64} {
  func.func @_se_kernel(%arg0: i32, %arg1: memref<2x32x16xf32, #tpu.memory_space<vmem>>, %arg2: memref<8x32xf32, #tpu.memory_space<vmem>>, %arg3: memref<1x8xf32, #tpu.memory_space<vmem>>, %arg4: memref<32x8xf32, #tpu.memory_space<vmem>>, %arg5: memref<1x32xf32, #tpu.memory_space<vmem>>, %arg6: memref<2x32x16xf32, #tpu.memory_space<vmem>>) attributes {dimension_semantics = [#tpu.dimension_semantics<parallel>], iteration_bounds = array<i64: 1>, scalar_prefetch = 0 : i64, scratch_operands = 0 : i64, tpu.core_type = #tpu.core_type<tc>, window_params = [{transform_indices = @transform_0, window_bounds = array<i64: 2, 32, 16>}, {pipeline_mode = #tpu.pipeline_mode<synchronous>, transform_indices = @transform_1, window_bounds = array<i64: 8, 32>}, {pipeline_mode = #tpu.pipeline_mode<synchronous>, transform_indices = @transform_2, window_bounds = array<i64: 1, 8>}, {pipeline_mode = #tpu.pipeline_mode<synchronous>, transform_indices = @transform_3, window_bounds = array<i64: 32, 8>}, {pipeline_mode = #tpu.pipeline_mode<synchronous>, transform_indices = @transform_4, window_bounds = array<i64: 1, 32>}, {transform_indices = @transform_5, window_bounds = array<i64: 2, 32, 16>}]} {
    %c0 = arith.constant 0 : index
    %c0_0 = arith.constant 0 : index
    %c0_1 = arith.constant 0 : index
    %0 = vector.load %arg1[%c0, %c0_0, %c0_1] : memref<2x32x16xf32, #tpu.memory_space<vmem>>, vector<2x32x16xf32>
    %cst = arith.constant dense<0.000000e+00> : vector<2x32xf32>
    %1 = vector.multi_reduction <add>, %0, %cst [2] : vector<2x32x16xf32> to vector<2x32xf32>
    %cst_2 = arith.constant 1.600000e+01 : f32
    %2 = vector.broadcast %cst_2 : f32 to vector<2x32xf32>
    %3 = arith.divf %1, %2 : vector<2x32xf32>
    %c0_3 = arith.constant 0 : index
    %c0_4 = arith.constant 0 : index
    %4 = vector.load %arg2[%c0_3, %c0_4] : memref<8x32xf32, #tpu.memory_space<vmem>>, vector<8x32xf32>
    %cst_5 = arith.constant dense<0.000000e+00> : vector<2x8xf32>
    %5 = tpu.matmul %3, %4, %cst_5 {dimension_numbers = #tpu.dot_dimension_numbers<[1], [1], [0], [0], [0, 0, 1, 0], [], []>} : vector<2x32xf32>, vector<8x32xf32>, vector<2x8xf32> -> vector<2x8xf32>
    %c0_6 = arith.constant 0 : index
    %c0_7 = arith.constant 0 : index
    %6 = vector.load %arg3[%c0_6, %c0_7] : memref<1x8xf32, #tpu.memory_space<vmem>>, vector<1x8xf32>
    %7 = vector.broadcast %6 : vector<1x8xf32> to vector<2x8xf32>
    %8 = arith.addf %5, %7 : vector<2x8xf32>
    %cst_8 = arith.constant 0.000000e+00 : f32
    %9 = vector.broadcast %cst_8 : f32 to vector<2x8xf32>
    %10 = arith.maximumf %8, %9 : vector<2x8xf32>
    %c0_9 = arith.constant 0 : index
    %c0_10 = arith.constant 0 : index
    %11 = vector.load %arg4[%c0_9, %c0_10] : memref<32x8xf32, #tpu.memory_space<vmem>>, vector<32x8xf32>
    %cst_11 = arith.constant dense<0.000000e+00> : vector<2x32xf32>
    %12 = tpu.matmul %10, %11, %cst_11 {dimension_numbers = #tpu.dot_dimension_numbers<[1], [1], [0], [0], [0, 0, 1, 0], [], []>} : vector<2x8xf32>, vector<32x8xf32>, vector<2x32xf32> -> vector<2x32xf32>
    %c0_12 = arith.constant 0 : index
    %c0_13 = arith.constant 0 : index
    %13 = vector.load %arg5[%c0_12, %c0_13] : memref<1x32xf32, #tpu.memory_space<vmem>>, vector<1x32xf32>
    %14 = vector.broadcast %13 : vector<1x32xf32> to vector<2x32xf32>
    %15 = arith.addf %12, %14 : vector<2x32xf32>
    %16 = arith.negf %15 : vector<2x32xf32>
    %17 = math.exp %16 : vector<2x32xf32>
    %cst_14 = arith.constant 1.000000e+00 : f32
    %18 = vector.broadcast %cst_14 : f32 to vector<2x32xf32>
    %19 = arith.addf %18, %17 : vector<2x32xf32>
    %20 = arith.divf %18, %19 : vector<2x32xf32>
    %21 = vector.shape_cast %20 : vector<2x32xf32> to vector<2x32x1xf32>
    %22 = vector.broadcast %21 : vector<2x32x1xf32> to vector<2x32x16xf32>
    %23 = arith.mulf %0, %22 : vector<2x32x16xf32>
    %c0_15 = arith.constant 0 : index
    %c0_16 = arith.constant 0 : index
    %c0_17 = arith.constant 0 : index
    %24 = vector.load %arg6[%c0_15, %c0_16, %c0_17] : memref<2x32x16xf32, #tpu.memory_space<vmem>>, vector<2x32x16xf32>
    tpu.vector_store %arg6[%c0_15, %c0_16, %c0_17], %23 {strides = array<i32>} : memref<2x32x16xf32, #tpu.memory_space<vmem>>, vector<2x32x16xf32>,
    return
  }
  func.func @transform_0(%arg0: i32) -> (i32, i32, i32) {
    %c0_i32 = arith.constant 0 : i32
    %c0_i32_0 = arith.constant 0 : i32
    %c0_i32_1 = arith.constant 0 : i32
    return %arg0, %c0_i32, %c0_i32_0 : i32, i32, i32
  }
  func.func @transform_1(%arg0: i32) -> (i32, i32) {
    %c0_i32 = arith.constant 0 : i32
    %c0_i32_0 = arith.constant 0 : i32
    %c0_i32_1 = arith.constant 0 : i32
    return %c0_i32, %c0_i32_0 : i32, i32
  }
  func.func @transform_2(%arg0: i32) -> (i32, i32) {
    %c0_i32 = arith.constant 0 : i32
    %c0_i32_0 = arith.constant 0 : i32
    %c0_i32_1 = arith.constant 0 : i32
    return %c0_i32, %c0_i32_0 : i32, i32
  }
  func.func @transform_3(%arg0: i32) -> (i32, i32) {
    %c0_i32 = arith.constant 0 : i32
    %c0_i32_0 = arith.constant 0 : i32
    %c0_i32_1 = arith.constant 0 : i32
    return %c0_i32, %c0_i32_0 : i32, i32
  }
  func.func @transform_4(%arg0: i32) -> (i32, i32) {
    %c0_i32 = arith.constant 0 : i32
    %c0_i32_0 = arith.constant 0 : i32
    %c0_i32_1 = arith.constant 0 : i32
    return %c0_i32, %c0_i32_0 : i32, i32
  }
  func.func @transform_5(%arg0: i32) -> (i32, i32, i32) {
    %c0_i32 = arith.constant 0 : i32
    %c0_i32_0 = arith.constant 0 : i32
    %c0_i32_1 = arith.constant 0 : i32
    return %arg0, %c0_i32, %c0_i32_0 : i32, i32, i32
  }
}

</mosaic_0001>

<llo_original>
// kernel: tpu_custom_call.1
$region0: #{tpu_custom_call.1}
  #allocation0 [shape = 'u32[]', space=smem, size = 0x4, offset = 0x4, fixed_abs, tag = 'smem constant byte address 0x4 - core index']
  #allocation1 [shape = 'u32[144,128]{1,0:T(1,128)}', space=vmem, size = 0x12000, scoped, tag = 'internal scratch']
  %s0 = inlined_call_operand.vmem [shape: f32[2,32,16], index: 0, kind: input, shape index: {}]
  %s1 = inlined_call_operand.vmem [shape: f32[8,32], index: 1, kind: input, shape index: {}]
  %s2 = inlined_call_operand.vmem [shape: f32[1,8], index: 2, kind: input, shape index: {}]
  %s3 = inlined_call_operand.vmem [shape: f32[32,8], index: 3, kind: input, shape index: {}]
  %s4 = inlined_call_operand.vmem [shape: f32[1,32], index: 4, kind: input, shape index: {}]
  %s5 = inlined_call_operand.vmem [shape: f32[2,32,16], index: 5, kind: output, shape index: {}]
  %s6 = sld [smem:[#allocation0]]
  $region30: #{tpu_custom_call.1} parent=0
    _
  %s8 = ssub.s32 1, %s6
  %s9 = scalar_select 0, %s8, %s6
  // Predicated region
  $region2: #{tpu_custom_call.1} parent=0 // pred_check
    _
  $region3: #{tpu_custom_call.1} parent=0 // pred_check_branch
    %11 = sbr.rel (0) target = $region5
  $region4: #{tpu_custom_call.1} parent=0 // pred_region
    _
  $region5: #{tpu_custom_call.1} parent=0 // pred_fallthru
    _
  // Predicated region
  $region6: #{tpu_custom_call.1} parent=0 // pred_check
    _
  $region7: #{tpu_custom_call.1} parent=0 // pred_check_branch
    %13 = sbr.rel (0) target = $region9
  $region8: #{tpu_custom_call.1} parent=0 // pred_region
    _
  $region9: #{tpu_custom_call.1} parent=0 // pred_fallthru
    _
  // Predicated region
  $region10: #{tpu_custom_call.1} parent=0 // pred_check
    _
  $region11: #{tpu_custom_call.1} parent=0 // pred_check_branch
    %15 = sbr.rel (0) target = $region13
  $region12: #{tpu_custom_call.1} parent=0 // pred_region
    _
  $region13: #{tpu_custom_call.1} parent=0 // pred_fallthru
    _
  // Predicated region
  $region14: #{tpu_custom_call.1} parent=0 // pred_check
    _
  $region15: #{tpu_custom_call.1} parent=0 // pred_check_branch
    %17 = sbr.rel (0) target = $region17
  $region16: #{tpu_custom_call.1} parent=0 // pred_region
    _
  $region17: #{tpu_custom_call.1} parent=0 // pred_fallthru
    _
  // Predicated region
  $region18: #{tpu_custom_call.1} parent=0 // pred_check
    _
  $region19: #{tpu_custom_call.1} parent=0 // pred_check_branch
    %19 = sbr.rel (0) target = $region21
  $region20: #{tpu_custom_call.1} parent=0 // pred_region
    _
  $region21: #{tpu_custom_call.1} parent=0 // pred_fallthru
    _
  %v20 = vld [vmem:[%s0] sm:$0xff]
  %v21 = vld [vmem:[%s0 + $0x8] sm:$0xff]
  %v22 = vld [vmem:[%s0 + $0x10] sm:$0xff]
  %v23 = vld [vmem:[%s0 + $0x18] sm:$0xff]
  %v24 = vld [vmem:[%s0 + $0x20] sm:$0xff]
  %v25 = vld [vmem:[%s0 + $0x28] sm:$0xff]
  %v26 = vld [vmem:[%s0 + $0x30] sm:$0xff]
  %v27 = vld [vmem:[%s0 + $0x38] sm:$0xff]
  %vm28 = vcmask 130048
  %v29 = vsel %vm28, %v20, 0.0
  %30 = vadd.xlane.f32.xlu0 %v29
  %v31 = vpop.xlane.xlu0 %30
  %v32 = vsel %vm28, %v21, 0.0
  %33 = vadd.xlane.f32.xlu0 %v32
  %v34 = vpop.xlane.xlu0 %33
  %v35 = vsel %vm28, %v22, 0.0
  %36 = vadd.xlane.f32.xlu0 %v35
  %v37 = vpop.xlane.xlu0 %36
  %v38 = vsel %vm28, %v23, 0.0
  %39 = vadd.xlane.f32.xlu0 %v38
  %v40 = vpop.xlane.xlu0 %39
  %v41 = vsel %vm28, %v24, 0.0
  %42 = vadd.xlane.f32.xlu0 %v41
  %v43 = vpop.xlane.xlu0 %42
  %v44 = vsel %vm28, %v25, 0.0
  %45 = vadd.xlane.f32.xlu0 %v44
  %v46 = vpop.xlane.xlu0 %45
  %v47 = vsel %vm28, %v26, 0.0
  %48 = vadd.xlane.f32.xlu0 %v47
  %v49 = vpop.xlane.xlu0 %48
  %v50 = vsel %vm28, %v27, 0.0
  %51 = vadd.xlane.f32.xlu0 %v50
  %v52 = vpop.xlane.xlu0 %51
  %v53 = vrcp.pop 16.0
  %v54 = vmul.f32 %v31, %v53
  %v55 = vmul.f32 %v34, %v53
  %v56 = vmul.f32 %v37, %v53
  %v57 = vmul.f32 %v40, %v53
  %v58 = vmul.f32 %v43, %v53
  %v59 = vmul.f32 %v46, %v53
  %v60 = vmul.f32 %v49, %v53
  %v61 = vmul.f32 %v52, %v53
  %v62 = vld [vmem:[%s1] sm:$0xff]
  %v63 = vld [vmem:[%s2] sm:$0x1]
  %v65 = vlaneseq
  %v66 = vshrl.u32 %v65, 7
  %v67 = vsub.s32 0, %v66
  %v68 = vrot.slane %v63, %v67
  %v78 = vlaneseq
  %v79 = vand.u32 %v78, 127
  %v80 = vlaneseq
  %v81 = vshrl.u32 %v80, 7
  %v82 = vsub.s32 %v79, %v81
  %v83 = vrot.slane %v54, %v82
  %v84 = vadd.s32 %v79, 4294967288
  %v85 = vlaneseq
  %v86 = vshrl.u32 %v85, 7
  %v87 = vsub.s32 %v84, %v86
  %v88 = vrot.slane %v55, %v87
  %vm89 = vcmask 130112
  %v90 = vsel %vm89, %v88, %v83
  %v91 = vadd.s32 %v79, 4294967280
  %v92 = vlaneseq
  %v93 = vshrl.u32 %v92, 7
  %v94 = vsub.s32 %v91, %v93
  %v95 = vrot.slane %v56, %v94
  %vm96 = vcmask 195712
  %v97 = vsel %vm96, %v95, %v90
  %v98 = vadd.s32 %v79, 4294967272
  %v99 = vlaneseq
  %v100 = vshrl.u32 %v99, 7
  %v101 = vsub.s32 %v98, %v100
  %v102 = vrot.slane %v57, %v101
  %vm103 = vcmask 261312
  %v104 = vsel %vm103, %v102, %v97
  %v105 = vlaneseq
  %v106 = vshrl.u32 %v105, 7
  %v107 = vsub.s32 %v79, %v106
  %v108 = vrot.slane %v58, %v107
  %v109 = vlaneseq
  %v110 = vshrl.u32 %v109, 7
  %v111 = vsub.s32 %v84, %v110
  %v112 = vrot.slane %v59, %v111
  %v113 = vsel %vm89, %v112, %v108
  %v114 = vlaneseq
  %v115 = vshrl.u32 %v114, 7
  %v116 = vsub.s32 %v91, %v115
  %v117 = vrot.slane %v60, %v116
  %v118 = vsel %vm96, %v117, %v113
  %v119 = vlaneseq
  %v120 = vshrl.u32 %v119, 7
  %v121 = vsub.s32 %v98, %v120
  %v122 = vrot.slane %v61, %v121
  %v123 = vsel %vm103, %v122, %v118
  %vm124 = vcmask 1041409
  %v125 = vsel %vm124, %v123, %v104
  %vm126 = vcmask 261120
  %v127 = vsel %vm126, %v125, 0
  %v130 = vsel %vm126, %v62, 0
  %132 = vmatprep.subr.mxu0 0.0
  %133 = vmatpush1.xpose.msra.mxu0 0.0
  %134 = vmatprep.subr.mxu0 0.0
  %135 = vmatpush1.xpose.msra.mxu0 0.0
  %136 = vmatprep.subr.mxu0 0.0
  %137 = vmatpush1.xpose.msra.mxu0 0.0
  %138 = vmatprep.subr.mxu0 0.0
  %139 = vmatpush1.xpose.msra.mxu0 0.0
  %140 = vmatprep.subr.mxu0 0.0
  %141 = vmatpush1.xpose.msra.mxu0 0.0
  %142 = vmatprep.subr.mxu0 0.0
  %143 = vmatpush1.xpose.msra.mxu0 0.0
  %144 = vmatprep.subr.mxu0 0.0
  %145 = vmatpush1.xpose.msra.mxu0 0.0
  %146 = vmatprep.subr.mxu0 0.0
  %147 = vmatpush1.xpose.msra.mxu0 0.0
  %148 = vmatprep.subr.mxu0 0.0
  %149 = vmatpush1.xpose.msra.mxu0 0.0
  %150 = vmatprep.subr.mxu0 0.0
  %151 = vmatpush1.xpose.msra.mxu0 0.0
  %152 = vmatprep.subr.mxu0 0.0
  %153 = vmatpush1.xpose.msra.mxu0 0.0
  %154 = vmatprep.subr.mxu0 0.0
  %155 = vmatpush1.xpose.msra.mxu0 0.0
  %156 = vmatprep.subr.mxu0 0.0
  %157 = vmatpush1.xpose.msra.mxu0 0.0
  %158 = vmatprep.subr.mxu0 0.0
  %159 = vmatpush1.xpose.msra.mxu0 0.0
  %160 = vmatprep.subr.mxu0 0.0
  %161 = vmatpush1.xpose.msra.mxu0 0.0
  %162 = vmatprep.subr.mxu0 0.0
  %163 = vmatpush1.xpose.msra.mxu0 %v130
  %164 = vmatprep.subr.mxu0 0.0
  %165 = vmatpush2.xpose.msra.mxu0 0.0
  %166 = vmatprep.subr.mxu0 0.0
  %167 = vmatpush2.xpose.msra.mxu0 0.0
  %168 = vmatprep.subr.mxu0 0.0
  %169 = vmatpush2.xpose.msra.mxu0 0.0
  %170 = vmatprep.subr.mxu0 0.0
  %171 = vmatpush2.xpose.msra.mxu0 0.0
  %172 = vmatprep.subr.mxu0 0.0
  %173 = vmatpush2.xpose.msra.mxu0 0.0
  %174 = vmatprep.subr.mxu0 0.0
  %175 = vmatpush2.xpose.msra.mxu0 0.0
  %176 = vmatprep.subr.mxu0 0.0
  %177 = vmatpush2.xpose.msra.mxu0 0.0
  %178 = vmatprep.subr.mxu0 0.0
  %179 = vmatpush2.xpose.msra.mxu0 0.0
  %180 = vmatprep.subr.mxu0 0.0
  %181 = vmatpush2.xpose.msra.mxu0 0.0
  %182 = vmatprep.subr.mxu0 0.0
  %183 = vmatpush2.xpose.msra.mxu0 0.0
  %184 = vmatprep.subr.mxu0 0.0
  %185 = vmatpush2.xpose.msra.mxu0 0.0
  %186 = vmatprep.subr.mxu0 0.0
  %187 = vmatpush2.xpose.msra.mxu0 0.0
  %188 = vmatprep.subr.mxu0 0.0
  %189 = vmatpush2.xpose.msra.mxu0 0.0
  %190 = vmatprep.subr.mxu0 0.0
  %191 = vmatpush2.xpose.msra.mxu0 0.0
  %192 = vmatprep.subr.mxu0 0.0
  %193 = vmatpush2.xpose.msra.mxu0 0.0
  %194 = vmatprep.subr.mxu0 0.0
  %195 = vmatpush2.xpose.msra.mxu0 0.0
  %196 = vmatprep.mubr.f32.mxu0 0.0
  %197 = vmatmul.mubr.f32.gmra.mxu0 %v127
  %v198 = vpop.f32.mrf.mxu0
  %v199 = vadd.f32 %v68, %v198
  %v200 = vpop.f32.mrf.mxu0
  %201 = vdwg.mxu0
  %v202 = vmax.f32 %v199, 0.0
  %v203 = vld [vmem:[%s3] sm:$0xff]
  %v204 = vld [vmem:[%s3 + $0x8] sm:$0xff]
  %v205 = vld [vmem:[%s3 + $0x10] sm:$0xff]
  %v206 = vld [vmem:[%s3 + $0x18] sm:$0xff]
  %v207 = vld [vmem:[%s4] sm:$0x1]
  %v209 = vlaneseq
  %v210 = vshrl.u32 %v209, 7
  %v211 = vsub.s32 0, %v210
  %v212 = vrot.slane %v207, %v211
  %vm214 = vcmask 64512
  %v216 = vsel %vm214, %v202, 0
  %v219 = vsel %vm214, %v203, 0
  %v222 = vsel %vm214, %v204, 0
  %v225 = vsel %vm214, %v205, 0
  %v228 = vsel %vm214, %v206, 0
  %230 = vmatprep.subr.mxu0 0.0
  %231 = vmatpush1.xpose.msra.mxu0 0.0
  %232 = vmatprep.subr.mxu0 0.0
  %233 = vmatpush1.xpose.msra.mxu0 0.0
  %234 = vmatprep.subr.mxu0 0.0
  %235 = vmatpush1.xpose.msra.mxu0 0.0
  %236 = vmatprep.subr.mxu0 0.0
  %237 = vmatpush1.xpose.msra.mxu0 0.0
  %238 = vmatprep.subr.mxu0 0.0
  %239 = vmatpush1.xpose.msra.mxu0 0.0
  %240 = vmatprep.subr.mxu0 0.0
  %241 = vmatpush1.xpose.msra.mxu0 0.0
  %242 = vmatprep.subr.mxu0 0.0
  %243 = vmatpush1.xpose.msra.mxu0 0.0
  %244 = vmatprep.subr.mxu0 0.0
  %245 = vmatpush1.xpose.msra.mxu0 0.0
  %246 = vmatprep.subr.mxu0 0.0
  %247 = vmatpush1.xpose.msra.mxu0 0.0
  %248 = vmatprep.subr.mxu0 0.0
  %249 = vmatpush1.xpose.msra.mxu0 0.0
  %250 = vmatprep.subr.mxu0 0.0
  %251 = vmatpush1.xpose.msra.mxu0 0.0
  %252 = vmatprep.subr.mxu0 0.0
  %253 = vmatpush1.xpose.msra.mxu0 0.0
  %254 = vmatprep.subr.mxu0 0.0
  %255 = vmatpush1.xpose.msra.mxu0 %v228
  %256 = vmatprep.subr.mxu0 0.0
  %257 = vmatpush1.xpose.msra.mxu0 %v225
  %258 = vmatprep.subr.mxu0 0.0
  %259 = vmatpush1.xpose.msra.mxu0 %v222
  %260 = vmatprep.subr.mxu0 0.0
  %261 = vmatpush1.xpose.msra.mxu0 %v219
  %262 = vmatprep.subr.mxu0 0.0
  %263 = vmatpush2.xpose.msra.mxu0 0.0
  %264 = vmatprep.subr.mxu0 0.0
  %265 = vmatpush2.xpose.msra.mxu0 0.0
  %266 = vmatprep.subr.mxu0 0.0
  %267 = vmatpush2.xpose.msra.mxu0 0.0
  %268 = vmatprep.subr.mxu0 0.0
  %269 = vmatpush2.xpose.msra.mxu0 0.0
  %270 = vmatprep.subr.mxu0 0.0
  %271 = vmatpush2.xpose.msra.mxu0 0.0
  %272 = vmatprep.subr.mxu0 0.0
  %273 = vmatpush2.xpose.msra.mxu0 0.0
  %274 = vmatprep.subr.mxu0 0.0
  %275 = vmatpush2.xpose.msra.mxu0 0.0
  %276 = vmatprep.subr.mxu0 0.0
  %277 = vmatpush2.xpose.msra.mxu0 0.0
  %278 = vmatprep.subr.mxu0 0.0
  %279 = vmatpush2.xpose.msra.mxu0 0.0
  %280 = vmatprep.subr.mxu0 0.0
  %281 = vmatpush2.xpose.msra.mxu0 0.0
  %282 = vmatprep.subr.mxu0 0.0
  %283 = vmatpush2.xpose.msra.mxu0 0.0
  %284 = vmatprep.subr.mxu0 0.0
  %285 = vmatpush2.xpose.msra.mxu0 0.0
  %286 = vmatprep.subr.mxu0 0.0
  %287 = vmatpush2.xpose.msra.mxu0 0.0
  %288 = vmatprep.subr.mxu0 0.0
  %289 = vmatpush2.xpose.msra.mxu0 0.0
  %290 = vmatprep.subr.mxu0 0.0
  %291 = vmatpush2.xpose.msra.mxu0 0.0
  %292 = vmatprep.subr.mxu0 0.0
  %293 = vmatpush2.xpose.msra.mxu0 0.0
  %294 = vmatprep.mubr.f32.mxu0 0.0
  %295 = vmatmul.mubr.f32.gmra.mxu0 %v216
  %v296 = vpop.f32.mrf.mxu0
  %v297 = vadd.f32 %v212, %v296
  %v298 = vpop.f32.mrf.mxu0
  %299 = vdwg.mxu0
  %v300 = vxor.u32 %v297, 2147483648
  %v301 = vmul.f32 %v300, 1.442695
  %v302 = vpow.pop %v301
  %v303 = vadd.f32 %v302, 1.0
  %v304 = vrcp.pop %v303
  %v305 = vmul.f32 1.0, %v304
  %v306 = vlaneseq
  %v307 = vshrl.u32 %v306, 7
  %v308 = vsub.s32 0, %v307
  %v309 = vrot.slane %v305, %v308
  %311 = vbcast.lane.b32.xlu0 %v309, 256
  %v312 = vpop.permute.xlu0 %311
  %s314 = sor.u32 256, 8
  %315 = vbcast.lane.b32.xlu0 %v309, %s314
  %v316 = vpop.permute.xlu0 %315
  %s318 = sor.u32 256, 16
  %319 = vbcast.lane.b32.xlu0 %v309, %s318
  %v320 = vpop.permute.xlu0 %319
  %s322 = sor.u32 256, 24
  %323 = vbcast.lane.b32.xlu0 %v309, %s322
  %v324 = vpop.permute.xlu0 %323
  %v325 = vlaneseq
  %v326 = vshrl.u32 %v325, 7
  %v327 = vsub.s32 1, %v326
  %v328 = vrot.slane %v305, %v327
  %330 = vbcast.lane.b32.xlu0 %v328, 256
  %v331 = vpop.permute.xlu0 %330
  %s333 = sor.u32 256, 8
  %334 = vbcast.lane.b32.xlu0 %v328, %s333
  %v335 = vpop.permute.xlu0 %334
  %s337 = sor.u32 256, 16
  %338 = vbcast.lane.b32.xlu0 %v328, %s337
  %v339 = vpop.permute.xlu0 %338
  %s341 = sor.u32 256, 24
  %342 = vbcast.lane.b32.xlu0 %v328, %s341
  %v343 = vpop.permute.xlu0 %342
  %v344 = vmul.f32 %v20, %v312
  %v345 = vmul.f32 %v21, %v316
  %v346 = vmul.f32 %v22, %v320
  %v347 = vmul.f32 %v23, %v324
  %v348 = vmul.f32 %v24, %v331
  %v349 = vmul.f32 %v25, %v335
  %v350 = vmul.f32 %v26, %v339
  %v351 = vmul.f32 %v27, %v343
  %352 = vst.msk [vmem:[%s5] sm:$0xff] %vm28, %v344
  %353 = vst.msk [vmem:[%s5 + $0x8] sm:$0xff] %vm28, %v345
  %354 = vst.msk [vmem:[%s5 + $0x10] sm:$0xff] %vm28, %v346
  %355 = vst.msk [vmem:[%s5 + $0x18] sm:$0xff] %vm28, %v347
  %356 = vst.msk [vmem:[%s5 + $0x20] sm:$0xff] %vm28, %v348
  %357 = vst.msk [vmem:[%s5 + $0x28] sm:$0xff] %vm28, %v349
  %358 = vst.msk [vmem:[%s5 + $0x30] sm:$0xff] %vm28, %v350
  %359 = vst.msk [vmem:[%s5 + $0x38] sm:$0xff] %vm28, %v351
  // Predicated region
  $region22: #{tpu_custom_call.1} parent=0 // pred_check
    _
  $region23: #{tpu_custom_call.1} parent=0 // pred_check_branch
    %361 = sbr.rel (0) target = $region25
  $region24: #{tpu_custom_call.1} parent=0 // pred_region
    _
  $region25: #{tpu_custom_call.1} parent=0 // pred_fallthru
    _
  // Predicated region
  $region26: #{tpu_custom_call.1} parent=0 // pred_check
    _
  $region27: #{tpu_custom_call.1} parent=0 // pred_check_branch
    %363 = sbr.rel (0) target = $region29
  $region28: #{tpu_custom_call.1} parent=0 // pred_region
    _
  $region29: #{tpu_custom_call.1} parent=0 // pred_fallthru
    _

</llo_original>
